<compile_context>
chip_gen: v5e
topology: v5e:2x2
jax: 0.10.0
libtpu: 0.0.40
codegen_flags: <defaults>
</compile_context>

<pallas_src>
import jax
import jax.numpy as jnp
from jax.experimental import pallas as pl
from jax.experimental.pallas import tpu as pltpu

INPUT_SIZE = 4
HIDDEN_SIZE = 20
OUTPUT_SIZE = 3

LANE = 128
GROUP = LANE // INPUT_SIZE          # 32 samples per 128-lane row
ROW_ALIGN = 8 * GROUP               # 256-sample batch tile alignment (8 sublanes)
HID_COLS = GROUP * HIDDEN_SIZE      # 640 = 32 groups x 20 hidden units
OUT_COLS = GROUP * OUTPUT_SIZE      # 96  = 32 groups x 3 outputs

DEFAULT_BATCH_TILE = 4096           # samples per grid step (multiple of 256)


def _round_up(x, m):
    return int(pl.cdiv(x, m)) * m


def ann_one_hid_kernel(w1_ref, w2_ref, bias_ref, x_ref, out_ref):
    # x tile: [row_tile, 128]; each row = 32 samples x 4 features (interleaved).
    x = x_ref[...]
    b1 = bias_ref[0:1, :]                       # [1, 640]  (b1 tiled over 32 groups)
    b2 = bias_ref[1:2, 0:OUT_COLS]              # [1, 96]   (b2 tiled over 32 groups)

    # Layer 1: block-diagonal W1big keeps the per-sample contraction over the
    # 4 features of each group; result layout is [group-major, hidden-minor].
    h = jnp.dot(x, w1_ref[...], preferred_element_type=jnp.float32) + b1   # [rt, 640]
    h = jnp.maximum(h, 0.0)
    # Layer 2: block-diagonal W2big -> [group-major, output-minor] == row-major
    # flattening of the [samples, 3] output.
    y = jnp.dot(h, w2_ref[...], preferred_element_type=jnp.float32) + b2   # [rt, 96]
    out_ref[...] = y.astype(out_ref.dtype)


def pack_params(w1, b1, w2, b2):
    """Expand params into 32-way block-diagonal slabs + one bias slab.

    w1: [F_in, H], b1: [H], w2: [H, F_out], b2: [F_out]
    (JAX convention y = relu(x @ w1 + b1) @ w2 + b2, i.e. nn.Linear weights
     stored transposed.)
    """
    eye = jnp.eye(GROUP, dtype=jnp.float32)
    w1f = w1.astype(jnp.float32)
    w2f = w2.astype(jnp.float32)
    # w1big[(j, f), (j', o)] = delta(j, j') * w1[f, o]
    w1big = (eye[:, None, :, None] * w1f[None, :, None, :]).reshape(LANE, HID_COLS)
    # w2big[(j, h), (j', u)] = delta(j, j') * w2[h, u]
    w2big = (eye[:, None, :, None] * w2f[None, :, None, :]).reshape(HID_COLS, OUT_COLS)

    bias = jnp.zeros((2, HID_COLS), jnp.float32)
    bias = bias.at[0, :].set(jnp.tile(b1.astype(jnp.float32), GROUP))
    bias = bias.at[1, :OUT_COLS].set(jnp.tile(b2.astype(jnp.float32), GROUP))
    return w1big, w2big, bias


def ann_one_hid(x, w1, b1, w2, b2, *, batch_tile=DEFAULT_BATCH_TILE):
    """Forward pass of AnnOneHid. x: [B, 4] -> [B, 3]."""
    B = x.shape[0]

    # Batch tile (samples), aligned so the row tile is a multiple of 8 sublanes.
    tb = min(batch_tile, _round_up(max(B, 1), ROW_ALIGN))
    tb = _round_up(tb, ROW_ALIGN)
    b_pad = _round_up(B, tb)
    rt = tb // GROUP                 # rows per grid step
    rows = b_pad // GROUP            # total lane-dense rows

    xf = x.astype(jnp.float32)
    if b_pad != B:
        xf = jnp.pad(xf, ((0, b_pad - B), (0, 0)))
    x_view = xf.reshape(rows, LANE)                     # free reshape (row-major)

    w1big, w2big, bias = pack_params(w1, b1, w2, b2)

    y_view = pl.pallas_call(
        ann_one_hid_kernel,
        out_shape=jax.ShapeDtypeStruct((rows, OUT_COLS), jnp.float32),
        grid_spec=pl.GridSpec(
            grid=(rows // rt,),
            in_specs=[
                # Constant block index -> fetched once, stays resident in VMEM.
                pl.BlockSpec((LANE, HID_COLS), lambda i: (0, 0)),
                pl.BlockSpec((HID_COLS, OUT_COLS), lambda i: (0, 0)),
                pl.BlockSpec((2, HID_COLS), lambda i: (0, 0)),
                # Lane-dense x tile, pipelined across the batch grid.
                pl.BlockSpec((rt, LANE), lambda i: (i, 0)),
            ],
            out_specs=pl.BlockSpec((rt, OUT_COLS), lambda i: (i, 0)),
        ),
        compiler_params=pltpu.CompilerParams(
            dimension_semantics=("parallel",),   # batch tiles are independent
        ),
    )(w1big, w2big, bias, x_view)

    # [rows, 96] row-major == [b_pad, 3] row-major: free reshape, then crop padding.
    return y_view.reshape(b_pad, OUTPUT_SIZE)[:B]


def init_params(key):
    """Deterministic init mimicking nn.Linear's uniform(-1/sqrt(fan_in), 1/sqrt(fan_in))."""
    k1, k2, k3, k4 = jax.random.split(key, 4)
    bound1 = 1.0 / jnp.sqrt(INPUT_SIZE)
    bound2 = 1.0 / jnp.sqrt(HIDDEN_SIZE)
    w1 = jax.random.uniform(k1, (INPUT_SIZE, HIDDEN_SIZE), jnp.float32, -bound1, bound1)
    b1 = jax.random.uniform(k2, (HIDDEN_SIZE,), jnp.float32, -bound1, bound1)
    w2 = jax.random.uniform(k3, (HIDDEN_SIZE, OUTPUT_SIZE), jnp.float32, -bound2, bound2)
    b2 = jax.random.uniform(k4, (OUTPUT_SIZE,), jnp.float32, -bound2, bound2)
    return w1, b1, w2, b2


def _reference(x, w1, b1, w2, b2):
    return jnp.maximum(x @ w1 + b1[None, :], 0.0) @ w2 + b2[None, :]


if __name__ == "__main__":
    key = jax.random.PRNGKey(0)
    kx, kx2, kx3, kp = jax.random.split(key, 4)
    w1, b1, w2, b2 = init_params(kp)

    # Small batch (single grid step after padding to one 256-sample tile).
    batch = 8
    x = jax.random.normal(kx, (batch, INPUT_SIZE), jnp.float32)
    out = jax.block_until_ready(ann_one_hid(x, w1, b1, w2, b2))
    ref = _reference(x, w1, b1, w2, b2)
    assert out.shape == (batch, OUTPUT_SIZE)
    assert jnp.allclose(out, ref, atol=2e-5, rtol=2e-5)

    # Ragged batch (padding path, single tile at a small tile size).
    batch2 = 300
    x2 = jax.random.normal(kx2, (batch2, INPUT_SIZE), jnp.float32)
    out2 = jax.block_until_ready(ann_one_hid(x2, w1, b1, w2, b2, batch_tile=128))
    ref2 = _reference(x2, w1, b1, w2, b2)
    assert out2.shape == (batch2, OUTPUT_SIZE)
    assert jnp.allclose(out2, ref2, atol=2e-5, rtol=2e-5)

    # Multi-step grid path (4 batch tiles).
    batch3 = 1000
    x3 = jax.random.normal(kx3, (batch3, INPUT_SIZE), jnp.float32)
    out3 = jax.block_until_ready(ann_one_hid(x3, w1, b1, w2, b2, batch_tile=256))
    ref3 = _reference(x3, w1, b1, w2, b2)
    assert out3.shape == (batch3, OUTPUT_SIZE)
    assert jnp.allclose(out3, ref3, atol=2e-5, rtol=2e-5)

    print("KERNEL_OK")
</pallas_src>

<mosaic_0001>
module attributes {stable_mosaic.version = 11 : i64} {
  func.func @ann_one_hid_kernel(%arg0: i32, %arg1: memref<128x640xf32, #tpu.memory_space<vmem>>, %arg2: memref<640x96xf32, #tpu.memory_space<vmem>>, %arg3: memref<2x640xf32, #tpu.memory_space<vmem>>, %arg4: memref<8x128xf32, #tpu.memory_space<vmem>>, %arg5: memref<8x96xf32, #tpu.memory_space<vmem>>) attributes {dimension_semantics = [#tpu.dimension_semantics<parallel>], iteration_bounds = array<i64: 1>, scalar_prefetch = 0 : i64, scratch_operands = 0 : i64, tpu.core_type = #tpu.core_type<tc>, window_params = [{pipeline_mode = #tpu.pipeline_mode<synchronous>, transform_indices = @transform_0, window_bounds = array<i64: 128, 640>}, {pipeline_mode = #tpu.pipeline_mode<synchronous>, transform_indices = @transform_1, window_bounds = array<i64: 640, 96>}, {pipeline_mode = #tpu.pipeline_mode<synchronous>, transform_indices = @transform_2, window_bounds = array<i64: 2, 640>}, {transform_indices = @transform_3, window_bounds = array<i64: 8, 128>}, {transform_indices = @transform_4, window_bounds = array<i64: 8, 96>}]} {
    %c0 = arith.constant 0 : index
    %c0_0 = arith.constant 0 : index
    %0 = vector.load %arg4[%c0, %c0_0] : memref<8x128xf32, #tpu.memory_space<vmem>>, vector<8x128xf32>
    %c0_1 = arith.constant 0 : index
    %c0_2 = arith.constant 0 : index
    %1 = vector.load %arg3[%c0_1, %c0_2] : memref<2x640xf32, #tpu.memory_space<vmem>>, vector<1x640xf32>
    %c1 = arith.constant 1 : index
    %c0_3 = arith.constant 0 : index
    %2 = vector.load %arg3[%c1, %c0_3] : memref<2x640xf32, #tpu.memory_space<vmem>>, vector<1x96xf32>
    %c0_4 = arith.constant 0 : index
    %c0_5 = arith.constant 0 : index
    %3 = vector.load %arg1[%c0_4, %c0_5] : memref<128x640xf32, #tpu.memory_space<vmem>>, vector<128x640xf32>
    %cst = arith.constant dense<0.000000e+00> : vector<8x640xf32>
    %4 = tpu.matmul %0, %3, %cst {dimension_numbers = #tpu.dot_dimension_numbers<[1], [0], [0], [1], [0, 0, 1, 1], [], []>} : vector<8x128xf32>, vector<128x640xf32>, vector<8x640xf32> -> vector<8x640xf32>
    %5 = vector.broadcast %1 : vector<1x640xf32> to vector<8x640xf32>
    %6 = arith.addf %4, %5 : vector<8x640xf32>
    %cst_6 = arith.constant 0.000000e+00 : f32
    %7 = vector.broadcast %cst_6 : f32 to vector<8x640xf32>
    %8 = arith.maximumf %6, %7 : vector<8x640xf32>
    %c0_7 = arith.constant 0 : index
    %c0_8 = arith.constant 0 : index
    %9 = vector.load %arg2[%c0_7, %c0_8] : memref<640x96xf32, #tpu.memory_space<vmem>>, vector<640x96xf32>
    %cst_9 = arith.constant dense<0.000000e+00> : vector<8x96xf32>
    %10 = tpu.matmul %8, %9, %cst_9 {dimension_numbers = #tpu.dot_dimension_numbers<[1], [0], [0], [1], [0, 0, 1, 1], [], []>} : vector<8x640xf32>, vector<640x96xf32>, vector<8x96xf32> -> vector<8x96xf32>
    %11 = vector.broadcast %2 : vector<1x96xf32> to vector<8x96xf32>
    %12 = arith.addf %10, %11 : vector<8x96xf32>
    %c0_10 = arith.constant 0 : index
    %c0_11 = arith.constant 0 : index
    %13 = vector.load %arg5[%c0_10, %c0_11] : memref<8x96xf32, #tpu.memory_space<vmem>>, vector<8x96xf32>
    tpu.vector_store %arg5[%c0_10, %c0_11], %12 {strides = array<i32>} : memref<8x96xf32, #tpu.memory_space<vmem>>, vector<8x96xf32>,
    return
  }
  func.func @transform_0(%arg0: i32) -> (i32, i32) {
    %c0_i32 = arith.constant 0 : i32
    %c0_i32_0 = arith.constant 0 : i32
    %c0_i32_1 = arith.constant 0 : i32
    return %c0_i32, %c0_i32_0 : i32, i32
  }
  func.func @transform_1(%arg0: i32) -> (i32, i32) {
    %c0_i32 = arith.constant 0 : i32
    %c0_i32_0 = arith.constant 0 : i32
    %c0_i32_1 = arith.constant 0 : i32
    return %c0_i32, %c0_i32_0 : i32, i32
  }
  func.func @transform_2(%arg0: i32) -> (i32, i32) {
    %c0_i32 = arith.constant 0 : i32
    %c0_i32_0 = arith.constant 0 : i32
    %c0_i32_1 = arith.constant 0 : i32
    return %c0_i32, %c0_i32_0 : i32, i32
  }
  func.func @transform_3(%arg0: i32) -> (i32, i32) {
    %c0_i32 = arith.constant 0 : i32
    %c0_i32_0 = arith.constant 0 : i32
    return %arg0, %c0_i32 : i32, i32
  }
  func.func @transform_4(%arg0: i32) -> (i32, i32) {
    %c0_i32 = arith.constant 0 : i32
    %c0_i32_0 = arith.constant 0 : i32
    return %arg0, %c0_i32 : i32, i32
  }
}

</mosaic_0001>

<llo_original>
// kernel: tpu_custom_call.1
$region0: #{tpu_custom_call.1}
  #allocation0 [shape = 'u32[]', space=smem, size = 0x4, offset = 0x4, fixed_abs, tag = 'smem constant byte address 0x4 - core index']
  #allocation1 [shape = 'u32[72,128]{1,0:T(1,128)}', space=vmem, size = 0x9000, scoped, tag = 'internal scratch']
  %s0 = inlined_call_operand.vmem [shape: f32[128,640], index: 0, kind: input, shape index: {}]
  %s1 = inlined_call_operand.vmem [shape: f32[640,96], index: 1, kind: input, shape index: {}]
  %s2 = inlined_call_operand.vmem [shape: f32[2,640], index: 2, kind: input, shape index: {}]
  %s3 = inlined_call_operand.vmem [shape: f32[8,128], index: 3, kind: input, shape index: {}]
  %s4 = inlined_call_operand.hbm [shape: f32[8,96], index: 4, kind: output, shape index: {}]
  %s5 = sld [smem:[#allocation0]]
  $region26: #{tpu_custom_call.1} parent=0
    _
  %s7 = ssub.s32 1, %s5
  %s8 = scalar_select 0, %s7, %s5
  $region1: #{tpu_custom_call.1} parent=0
    #allocation2 [shape = 'u8[4096]{0}', space=vmem, size = 0x1000, scoped, tag = 'output window, operand 0, single buffered']
    #allocation3 [shape = 's32[1]{0}', space=sflag, size = 0x4, scoped, tag = 'scoped memory for tpu_custom_call.1']
    %9 = vsyncpa [#allocation3], 0
    // Predicated region
    $region2: #{tpu_custom_call.1} parent=1 // pred_check
      _
    $region3: #{tpu_custom_call.1} parent=1 // pred_check_branch
      %11 = sbr.rel (0) target = $region5
    $region4: #{tpu_custom_call.1} parent=1 // pred_region
      _
    $region5: #{tpu_custom_call.1} parent=1 // pred_fallthru
      _
    // Predicated region
    $region6: #{tpu_custom_call.1} parent=1 // pred_check
      _
    $region7: #{tpu_custom_call.1} parent=1 // pred_check_branch
      %13 = sbr.rel (0) target = $region9
    $region8: #{tpu_custom_call.1} parent=1 // pred_region
      _
    $region9: #{tpu_custom_call.1} parent=1 // pred_fallthru
      _
    // Predicated region
    $region10: #{tpu_custom_call.1} parent=1 // pred_check
      _
    $region11: #{tpu_custom_call.1} parent=1 // pred_check_branch
      %15 = sbr.rel (0) target = $region13
    $region12: #{tpu_custom_call.1} parent=1 // pred_region
      _
    $region13: #{tpu_custom_call.1} parent=1 // pred_fallthru
      _
    // Predicated region
    $region14: #{tpu_custom_call.1} parent=1 // pred_check
      _
    $region15: #{tpu_custom_call.1} parent=1 // pred_check_branch
      %17 = sbr.rel (0) target = $region17
    $region16: #{tpu_custom_call.1} parent=1 // pred_region
      _
    $region17: #{tpu_custom_call.1} parent=1 // pred_fallthru
      _
    %v18 = vld [vmem:[%s3] sm:$0xff]
    %v19 = vld [vmem:[%s2] ss:$2 sm:$0x1f]
    %v20 = vld [vmem:[%s2 + $0x1] sm:$0x1]
    %v21 = vld [vmem:[%s0] sm:$0xff]
    %v22 = vld [vmem:[%s0 + $0x8] sm:$0xff]
    %v23 = vld [vmem:[%s0 + $0x10] sm:$0xff]
    %v24 = vld [vmem:[%s0 + $0x18] sm:$0xff]
    %v25 = vld [vmem:[%s0 + $0x20] sm:$0xff]
    %v26 = vld [vmem:[%s0 + $0x28] sm:$0xff]
    %v27 = vld [vmem:[%s0 + $0x30] sm:$0xff]
    %v28 = vld [vmem:[%s0 + $0x38] sm:$0xff]
    %v29 = vld [vmem:[%s0 + $0x40] sm:$0xff]
    %v30 = vld [vmem:[%s0 + $0x48] sm:$0xff]
    %v31 = vld [vmem:[%s0 + $0x50] sm:$0xff]
    %v32 = vld [vmem:[%s0 + $0x58] sm:$0xff]
    %v33 = vld [vmem:[%s0 + $0x60] sm:$0xff]
    %v34 = vld [vmem:[%s0 + $0x68] sm:$0xff]
    %v35 = vld [vmem:[%s0 + $0x70] sm:$0xff]
    %v36 = vld [vmem:[%s0 + $0x78] sm:$0xff]
    %v37 = vld [vmem:[%s0 + $0x80] sm:$0xff]
    %v38 = vld [vmem:[%s0 + $0x88] sm:$0xff]
    %v39 = vld [vmem:[%s0 + $0x90] sm:$0xff]
    %v40 = vld [vmem:[%s0 + $0x98] sm:$0xff]
    %v41 = vld [vmem:[%s0 + $0xa0] sm:$0xff]
    %v42 = vld [vmem:[%s0 + $0xa8] sm:$0xff]
    %v43 = vld [vmem:[%s0 + $0xb0] sm:$0xff]
    %v44 = vld [vmem:[%s0 + $0xb8] sm:$0xff]
    %v45 = vld [vmem:[%s0 + $0xc0] sm:$0xff]
    %v46 = vld [vmem:[%s0 + $0xc8] sm:$0xff]
    %v47 = vld [vmem:[%s0 + $0xd0] sm:$0xff]
    %v48 = vld [vmem:[%s0 + $0xd8] sm:$0xff]
    %v49 = vld [vmem:[%s0 + $0xe0] sm:$0xff]
    %v50 = vld [vmem:[%s0 + $0xe8] sm:$0xff]
    %v51 = vld [vmem:[%s0 + $0xf0] sm:$0xff]
    %v52 = vld [vmem:[%s0 + $0xf8] sm:$0xff]
    %v53 = vld [vmem:[%s0 + $0x100] sm:$0xff]
    %v54 = vld [vmem:[%s0 + $0x108] sm:$0xff]
    %v55 = vld [vmem:[%s0 + $0x110] sm:$0xff]
    %v56 = vld [vmem:[%s0 + $0x118] sm:$0xff]
    %v57 = vld [vmem:[%s0 + $0x120] sm:$0xff]
    %v58 = vld [vmem:[%s0 + $0x128] sm:$0xff]
    %v59 = vld [vmem:[%s0 + $0x130] sm:$0xff]
    %v60 = vld [vmem:[%s0 + $0x138] sm:$0xff]
    %v61 = vld [vmem:[%s0 + $0x140] sm:$0xff]
    %v62 = vld [vmem:[%s0 + $0x148] sm:$0xff]
    %v63 = vld [vmem:[%s0 + $0x150] sm:$0xff]
    %v64 = vld [vmem:[%s0 + $0x158] sm:$0xff]
    %v65 = vld [vmem:[%s0 + $0x160] sm:$0xff]
    %v66 = vld [vmem:[%s0 + $0x168] sm:$0xff]
    %v67 = vld [vmem:[%s0 + $0x170] sm:$0xff]
    %v68 = vld [vmem:[%s0 + $0x178] sm:$0xff]
    %v69 = vld [vmem:[%s0 + $0x180] sm:$0xff]
    %v70 = vld [vmem:[%s0 + $0x188] sm:$0xff]
    %v71 = vld [vmem:[%s0 + $0x190] sm:$0xff]
    %v72 = vld [vmem:[%s0 + $0x198] sm:$0xff]
    %v73 = vld [vmem:[%s0 + $0x1a0] sm:$0xff]
    %v74 = vld [vmem:[%s0 + $0x1a8] sm:$0xff]
    %v75 = vld [vmem:[%s0 + $0x1b0] sm:$0xff]
    %v76 = vld [vmem:[%s0 + $0x1b8] sm:$0xff]
    %v77 = vld [vmem:[%s0 + $0x1c0] sm:$0xff]
    %v78 = vld [vmem:[%s0 + $0x1c8] sm:$0xff]
    %v79 = vld [vmem:[%s0 + $0x1d0] sm:$0xff]
    %v80 = vld [vmem:[%s0 + $0x1d8] sm:$0xff]
    %v81 = vld [vmem:[%s0 + $0x1e0] sm:$0xff]
    %v82 = vld [vmem:[%s0 + $0x1e8] sm:$0xff]
    %v83 = vld [vmem:[%s0 + $0x1f0] sm:$0xff]
    %v84 = vld [vmem:[%s0 + $0x1f8] sm:$0xff]
    %v85 = vld [vmem:[%s0 + $0x200] sm:$0xff]
    %v86 = vld [vmem:[%s0 + $0x208] sm:$0xff]
    %v87 = vld [vmem:[%s0 + $0x210] sm:$0xff]
    %v88 = vld [vmem:[%s0 + $0x218] sm:$0xff]
    %v89 = vld [vmem:[%s0 + $0x220] sm:$0xff]
    %v90 = vld [vmem:[%s0 + $0x228] sm:$0xff]
    %v91 = vld [vmem:[%s0 + $0x230] sm:$0xff]
    %v92 = vld [vmem:[%s0 + $0x238] sm:$0xff]
    %v93 = vld [vmem:[%s0 + $0x240] sm:$0xff]
    %v94 = vld [vmem:[%s0 + $0x248] sm:$0xff]
    %v95 = vld [vmem:[%s0 + $0x250] sm:$0xff]
    %v96 = vld [vmem:[%s0 + $0x258] sm:$0xff]
    %v97 = vld [vmem:[%s0 + $0x260] sm:$0xff]
    %v98 = vld [vmem:[%s0 + $0x268] sm:$0xff]
    %v99 = vld [vmem:[%s0 + $0x270] sm:$0xff]
    %v100 = vld [vmem:[%s0 + $0x278] sm:$0xff]
    %v102 = vperm.slane %v19, 0
    %v103 = vperm.slane %v19, 1
    %v104 = vperm.slane %v19, 2
    %v105 = vperm.slane %v19, 3
    %v106 = vperm.slane %v19, 4
    %112 = vmatpush.msra.mxu0 %v96
    %113 = vmatpush.msra.mxu0 %v91
    %114 = vmatpush.msra.mxu0 %v86
    %115 = vmatpush.msra.mxu0 %v81
    %116 = vmatpush.msra.mxu0 %v76
    %117 = vmatpush.msra.mxu0 %v71
    %118 = vmatpush.msra.mxu0 %v66
    %119 = vmatpush.msra.mxu0 %v61
    %120 = vmatpush.msra.mxu0 %v56
    %121 = vmatpush.msra.mxu0 %v51
    %122 = vmatpush.msra.mxu0 %v46
    %123 = vmatpush.msra.mxu0 %v41
    %124 = vmatpush.msra.mxu0 %v36
    %125 = vmatpush.msra.mxu0 %v31
    %126 = vmatpush.msra.mxu0 %v26
    %127 = vmatpush.msra.mxu0 %v21
    %128 = vmatmul.f32.gmra.mxu0 %v18
    %v129 = vpop.f32.mrf.mxu0
    %v130 = vadd.f32 %v102, %v129
    %131 = vdwg.mxu0
    %132 = vmatpush.msra.mxu0 %v97
    %133 = vmatpush.msra.mxu0 %v92
    %134 = vmatpush.msra.mxu0 %v87
    %135 = vmatpush.msra.mxu0 %v82
    %136 = vmatpush.msra.mxu0 %v77
    %137 = vmatpush.msra.mxu0 %v72
    %138 = vmatpush.msra.mxu0 %v67
    %139 = vmatpush.msra.mxu0 %v62
    %140 = vmatpush.msra.mxu0 %v57
    %141 = vmatpush.msra.mxu0 %v52
    %142 = vmatpush.msra.mxu0 %v47
    %143 = vmatpush.msra.mxu0 %v42
    %144 = vmatpush.msra.mxu0 %v37
    %145 = vmatpush.msra.mxu0 %v32
    %146 = vmatpush.msra.mxu0 %v27
    %147 = vmatpush.msra.mxu0 %v22
    %148 = vmatmul.f32.gmra.mxu0 %v18
    %v149 = vpop.f32.mrf.mxu0
    %v150 = vadd.f32 %v103, %v149
    %151 = vdwg.mxu0
    %152 = vmatpush.msra.mxu0 %v98
    %153 = vmatpush.msra.mxu0 %v93
    %154 = vmatpush.msra.mxu0 %v88
    %155 = vmatpush.msra.mxu0 %v83
    %156 = vmatpush.msra.mxu0 %v78
    %157 = vmatpush.msra.mxu0 %v73
    %158 = vmatpush.msra.mxu0 %v68
    %159 = vmatpush.msra.mxu0 %v63
    %160 = vmatpush.msra.mxu0 %v58
    %161 = vmatpush.msra.mxu0 %v53
    %162 = vmatpush.msra.mxu0 %v48
    %163 = vmatpush.msra.mxu0 %v43
    %164 = vmatpush.msra.mxu0 %v38
    %165 = vmatpush.msra.mxu0 %v33
    %166 = vmatpush.msra.mxu0 %v28
    %167 = vmatpush.msra.mxu0 %v23
    %168 = vmatmul.f32.gmra.mxu0 %v18
    %v169 = vpop.f32.mrf.mxu0
    %v170 = vadd.f32 %v104, %v169
    %171 = vdwg.mxu0
    %172 = vmatpush.msra.mxu0 %v99
    %173 = vmatpush.msra.mxu0 %v94
    %174 = vmatpush.msra.mxu0 %v89
    %175 = vmatpush.msra.mxu0 %v84
    %176 = vmatpush.msra.mxu0 %v79
    %177 = vmatpush.msra.mxu0 %v74
    %178 = vmatpush.msra.mxu0 %v69
    %179 = vmatpush.msra.mxu0 %v64
    %180 = vmatpush.msra.mxu0 %v59
    %181 = vmatpush.msra.mxu0 %v54
    %182 = vmatpush.msra.mxu0 %v49
    %183 = vmatpush.msra.mxu0 %v44
    %184 = vmatpush.msra.mxu0 %v39
    %185 = vmatpush.msra.mxu0 %v34
    %186 = vmatpush.msra.mxu0 %v29
    %187 = vmatpush.msra.mxu0 %v24
    %188 = vmatmul.f32.gmra.mxu0 %v18
    %v189 = vpop.f32.mrf.mxu0
    %v190 = vadd.f32 %v105, %v189
    %191 = vdwg.mxu0
    %192 = vmatpush.msra.mxu0 %v100
    %193 = vmatpush.msra.mxu0 %v95
    %194 = vmatpush.msra.mxu0 %v90
    %195 = vmatpush.msra.mxu0 %v85
    %196 = vmatpush.msra.mxu0 %v80
    %197 = vmatpush.msra.mxu0 %v75
    %198 = vmatpush.msra.mxu0 %v70
    %199 = vmatpush.msra.mxu0 %v65
    %200 = vmatpush.msra.mxu0 %v60
    %201 = vmatpush.msra.mxu0 %v55
    %202 = vmatpush.msra.mxu0 %v50
    %203 = vmatpush.msra.mxu0 %v45
    %204 = vmatpush.msra.mxu0 %v40
    %205 = vmatpush.msra.mxu0 %v35
    %206 = vmatpush.msra.mxu0 %v30
    %207 = vmatpush.msra.mxu0 %v25
    %208 = vmatmul.f32.gmra.mxu0 %v18
    %v209 = vpop.f32.mrf.mxu0
    %v210 = vadd.f32 %v106, %v209
    %211 = vdwg.mxu0
    %v212 = vmax.f32 %v130, 0.0
    %v213 = vmax.f32 %v150, 0.0
    %v214 = vmax.f32 %v170, 0.0
    %v215 = vmax.f32 %v190, 0.0
    %v216 = vmax.f32 %v210, 0.0
    %v217 = vld [vmem:[%s1] sm:$0xff]
    %v218 = vld [vmem:[%s1 + $0x8] sm:$0xff]
    %v219 = vld [vmem:[%s1 + $0x10] sm:$0xff]
    %v220 = vld [vmem:[%s1 + $0x18] sm:$0xff]
    %v221 = vld [vmem:[%s1 + $0x20] sm:$0xff]
    %v222 = vld [vmem:[%s1 + $0x28] sm:$0xff]
    %v223 = vld [vmem:[%s1 + $0x30] sm:$0xff]
    %v224 = vld [vmem:[%s1 + $0x38] sm:$0xff]
    %v225 = vld [vmem:[%s1 + $0x40] sm:$0xff]
    %v226 = vld [vmem:[%s1 + $0x48] sm:$0xff]
    %v227 = vld [vmem:[%s1 + $0x50] sm:$0xff]
    %v228 = vld [vmem:[%s1 + $0x58] sm:$0xff]
    %v229 = vld [vmem:[%s1 + $0x60] sm:$0xff]
    %v230 = vld [vmem:[%s1 + $0x68] sm:$0xff]
    %v231 = vld [vmem:[%s1 + $0x70] sm:$0xff]
    %v232 = vld [vmem:[%s1 + $0x78] sm:$0xff]
    %v233 = vld [vmem:[%s1 + $0x80] sm:$0xff]
    %v234 = vld [vmem:[%s1 + $0x88] sm:$0xff]
    %v235 = vld [vmem:[%s1 + $0x90] sm:$0xff]
    %v236 = vld [vmem:[%s1 + $0x98] sm:$0xff]
    %v237 = vld [vmem:[%s1 + $0xa0] sm:$0xff]
    %v238 = vld [vmem:[%s1 + $0xa8] sm:$0xff]
    %v239 = vld [vmem:[%s1 + $0xb0] sm:$0xff]
    %v240 = vld [vmem:[%s1 + $0xb8] sm:$0xff]
    %v241 = vld [vmem:[%s1 + $0xc0] sm:$0xff]
    %v242 = vld [vmem:[%s1 + $0xc8] sm:$0xff]
    %v243 = vld [vmem:[%s1 + $0xd0] sm:$0xff]
    %v244 = vld [vmem:[%s1 + $0xd8] sm:$0xff]
    %v245 = vld [vmem:[%s1 + $0xe0] sm:$0xff]
    %v246 = vld [vmem:[%s1 + $0xe8] sm:$0xff]
    %v247 = vld [vmem:[%s1 + $0xf0] sm:$0xff]
    %v248 = vld [vmem:[%s1 + $0xf8] sm:$0xff]
    %v249 = vld [vmem:[%s1 + $0x100] sm:$0xff]
    %v250 = vld [vmem:[%s1 + $0x108] sm:$0xff]
    %v251 = vld [vmem:[%s1 + $0x110] sm:$0xff]
    %v252 = vld [vmem:[%s1 + $0x118] sm:$0xff]
    %v253 = vld [vmem:[%s1 + $0x120] sm:$0xff]
    %v254 = vld [vmem:[%s1 + $0x128] sm:$0xff]
    %v255 = vld [vmem:[%s1 + $0x130] sm:$0xff]
    %v256 = vld [vmem:[%s1 + $0x138] sm:$0xff]
    %v257 = vld [vmem:[%s1 + $0x140] sm:$0xff]
    %v258 = vld [vmem:[%s1 + $0x148] sm:$0xff]
    %v259 = vld [vmem:[%s1 + $0x150] sm:$0xff]
    %v260 = vld [vmem:[%s1 + $0x158] sm:$0xff]
    %v261 = vld [vmem:[%s1 + $0x160] sm:$0xff]
    %v262 = vld [vmem:[%s1 + $0x168] sm:$0xff]
    %v263 = vld [vmem:[%s1 + $0x170] sm:$0xff]
    %v264 = vld [vmem:[%s1 + $0x178] sm:$0xff]
    %v265 = vld [vmem:[%s1 + $0x180] sm:$0xff]
    %v266 = vld [vmem:[%s1 + $0x188] sm:$0xff]
    %v267 = vld [vmem:[%s1 + $0x190] sm:$0xff]
    %v268 = vld [vmem:[%s1 + $0x198] sm:$0xff]
    %v269 = vld [vmem:[%s1 + $0x1a0] sm:$0xff]
    %v270 = vld [vmem:[%s1 + $0x1a8] sm:$0xff]
    %v271 = vld [vmem:[%s1 + $0x1b0] sm:$0xff]
    %v272 = vld [vmem:[%s1 + $0x1b8] sm:$0xff]
    %v273 = vld [vmem:[%s1 + $0x1c0] sm:$0xff]
    %v274 = vld [vmem:[%s1 + $0x1c8] sm:$0xff]
    %v275 = vld [vmem:[%s1 + $0x1d0] sm:$0xff]
    %v276 = vld [vmem:[%s1 + $0x1d8] sm:$0xff]
    %v277 = vld [vmem:[%s1 + $0x1e0] sm:$0xff]
    %v278 = vld [vmem:[%s1 + $0x1e8] sm:$0xff]
    %v279 = vld [vmem:[%s1 + $0x1f0] sm:$0xff]
    %v280 = vld [vmem:[%s1 + $0x1f8] sm:$0xff]
    %v281 = vld [vmem:[%s1 + $0x200] sm:$0xff]
    %v282 = vld [vmem:[%s1 + $0x208] sm:$0xff]
    %v283 = vld [vmem:[%s1 + $0x210] sm:$0xff]
    %v284 = vld [vmem:[%s1 + $0x218] sm:$0xff]
    %v285 = vld [vmem:[%s1 + $0x220] sm:$0xff]
    %v286 = vld [vmem:[%s1 + $0x228] sm:$0xff]
    %v287 = vld [vmem:[%s1 + $0x230] sm:$0xff]
    %v288 = vld [vmem:[%s1 + $0x238] sm:$0xff]
    %v289 = vld [vmem:[%s1 + $0x240] sm:$0xff]
    %v290 = vld [vmem:[%s1 + $0x248] sm:$0xff]
    %v291 = vld [vmem:[%s1 + $0x250] sm:$0xff]
    %v292 = vld [vmem:[%s1 + $0x258] sm:$0xff]
    %v293 = vld [vmem:[%s1 + $0x260] sm:$0xff]
    %v294 = vld [vmem:[%s1 + $0x268] sm:$0xff]
    %v295 = vld [vmem:[%s1 + $0x270] sm:$0xff]
    %v296 = vld [vmem:[%s1 + $0x278] sm:$0xff]
    %v297 = vperm.slane %v20, 0
    %298 = vmatpush.msra.mxu0 %v232
    %299 = vmatpush.msra.mxu0 %v231
    %300 = vmatpush.msra.mxu0 %v230
    %301 = vmatpush.msra.mxu0 %v229
    %302 = vmatpush.msra.mxu0 %v228
    %303 = vmatpush.msra.mxu0 %v227
    %304 = vmatpush.msra.mxu0 %v226
    %305 = vmatpush.msra.mxu0 %v225
    %306 = vmatpush.msra.mxu0 %v224
    %307 = vmatpush.msra.mxu0 %v223
    %308 = vmatpush.msra.mxu0 %v222
    %309 = vmatpush.msra.mxu0 %v221
    %310 = vmatpush.msra.mxu0 %v220
    %311 = vmatpush.msra.mxu0 %v219
    %312 = vmatpush.msra.mxu0 %v218
    %313 = vmatpush.msra.mxu0 %v217
    %314 = vmatmul.f32.gmra.mxu0 %v212
    %v315 = vpop.f32.mrf.mxu0
    %v316 = vadd.f32 %v297, %v315
    %317 = vdwg.mxu0
    %318 = vmatpush.msra.mxu0 %v248
    %319 = vmatpush.msra.mxu0 %v247
    %320 = vmatpush.msra.mxu0 %v246
    %321 = vmatpush.msra.mxu0 %v245
    %322 = vmatpush.msra.mxu0 %v244
    %323 = vmatpush.msra.mxu0 %v243
    %324 = vmatpush.msra.mxu0 %v242
    %325 = vmatpush.msra.mxu0 %v241
    %326 = vmatpush.msra.mxu0 %v240
    %327 = vmatpush.msra.mxu0 %v239
    %328 = vmatpush.msra.mxu0 %v238
    %329 = vmatpush.msra.mxu0 %v237
    %330 = vmatpush.msra.mxu0 %v236
    %331 = vmatpush.msra.mxu0 %v235
    %332 = vmatpush.msra.mxu0 %v234
    %333 = vmatpush.msra.mxu0 %v233
    %334 = vmatmul.f32.gmra.mxu0 %v213
    %v335 = vpop.f32.mrf.mxu0
    %v336 = vadd.f32 %v316, %v335
    %337 = vdwg.mxu0
    %338 = vmatpush.msra.mxu0 %v264
    %339 = vmatpush.msra.mxu0 %v263
    %340 = vmatpush.msra.mxu0 %v262
    %341 = vmatpush.msra.mxu0 %v261
    %342 = vmatpush.msra.mxu0 %v260
    %343 = vmatpush.msra.mxu0 %v259
    %344 = vmatpush.msra.mxu0 %v258
    %345 = vmatpush.msra.mxu0 %v257
    %346 = vmatpush.msra.mxu0 %v256
    %347 = vmatpush.msra.mxu0 %v255
    %348 = vmatpush.msra.mxu0 %v254
    %349 = vmatpush.msra.mxu0 %v253
    %350 = vmatpush.msra.mxu0 %v252
    %351 = vmatpush.msra.mxu0 %v251
    %352 = vmatpush.msra.mxu0 %v250
    %353 = vmatpush.msra.mxu0 %v249
    %354 = vmatmul.f32.gmra.mxu0 %v214
    %v355 = vpop.f32.mrf.mxu0
    %v356 = vadd.f32 %v336, %v355
    %357 = vdwg.mxu0
    %358 = vmatpush.msra.mxu0 %v280
    %359 = vmatpush.msra.mxu0 %v279
    %360 = vmatpush.msra.mxu0 %v278
    %361 = vmatpush.msra.mxu0 %v277
    %362 = vmatpush.msra.mxu0 %v276
    %363 = vmatpush.msra.mxu0 %v275
    %364 = vmatpush.msra.mxu0 %v274
    %365 = vmatpush.msra.mxu0 %v273
    %366 = vmatpush.msra.mxu0 %v272
    %367 = vmatpush.msra.mxu0 %v271
    %368 = vmatpush.msra.mxu0 %v270
    %369 = vmatpush.msra.mxu0 %v269
    %370 = vmatpush.msra.mxu0 %v268
    %371 = vmatpush.msra.mxu0 %v267
    %372 = vmatpush.msra.mxu0 %v266
    %373 = vmatpush.msra.mxu0 %v265
    %374 = vmatmul.f32.gmra.mxu0 %v215
    %v375 = vpop.f32.mrf.mxu0
    %v376 = vadd.f32 %v356, %v375
    %377 = vdwg.mxu0
    %378 = vmatpush.msra.mxu0 %v296
    %379 = vmatpush.msra.mxu0 %v295
    %380 = vmatpush.msra.mxu0 %v294
    %381 = vmatpush.msra.mxu0 %v293
    %382 = vmatpush.msra.mxu0 %v292
    %383 = vmatpush.msra.mxu0 %v291
    %384 = vmatpush.msra.mxu0 %v290
    %385 = vmatpush.msra.mxu0 %v289
    %386 = vmatpush.msra.mxu0 %v288
    %387 = vmatpush.msra.mxu0 %v287
    %388 = vmatpush.msra.mxu0 %v286
    %389 = vmatpush.msra.mxu0 %v285
    %390 = vmatpush.msra.mxu0 %v284
    %391 = vmatpush.msra.mxu0 %v283
    %392 = vmatpush.msra.mxu0 %v282
    %393 = vmatpush.msra.mxu0 %v281
    %394 = vmatmul.f32.gmra.mxu0 %v216
    %v395 = vpop.f32.mrf.mxu0
    %v396 = vadd.f32 %v376, %v395
    %397 = vdwg.mxu0
    %vm398 = vcmask 785408
    %399 = vst.msk [vmem:[#allocation2] sm:$0xff] %vm398, %v396
    // Predicated region
    $region18: #{tpu_custom_call.1} parent=1 // pred_check
      _
    $region19: #{tpu_custom_call.1} parent=1 // pred_check_branch
      %401 = sbr.rel (0) target = $region21
    $region20: #{tpu_custom_call.1} parent=1 // pred_region
      %403 = vsyncadd [#allocation3], 0
      %s405 = sshll.u32 [#allocation2], 4
      %s406 = int_to_ptr.vmem [resolvable:$true] %s405
      %s407 = sshll.u32 %s4, 4
      %s408 = int_to_ptr.hbm [resolvable:$true] %s407
      %410 = dma.vmem_to_hbm [thread:$0]  %s406, 128, %s408, [#allocation3]
    $region21: #{tpu_custom_call.1} parent=1 // pred_fallthru
      _
    // Predicated region
    $region22: #{tpu_custom_call.1} parent=1 // pred_check
      _
    $region23: #{tpu_custom_call.1} parent=1 // pred_check_branch
      %412 = sbr.rel (0) target = $region25
    $region24: #{tpu_custom_call.1} parent=1 // pred_region
      %414 = dma.done [#allocation3], 128
    $region25: #{tpu_custom_call.1} parent=1 // pred_fallthru
      _
    %415 = vsyncpa [#allocation3], 1

</llo_original>
